<compile_context>
chip_gen: v7x
topology: tpu7x:2x2x1
jax: 0.10.0
libtpu: 0.0.40
codegen_flags: <defaults>
</compile_context>

<pallas_src>
import jax
import jax.numpy as jnp
from jax.experimental import pallas as pl
from jax.experimental.pallas import tpu as pltpu

BN_EPS = 1e-5
LANE = 128
SUBLANE = 8


def _round_up(x, m):
    return (x + m - 1) // m * m


def _make_decoder_kernel(n_layers, real_batch):
    """Builds a fused kernel for `n_layers` [Linear+BN+ReLU] layers.

    Kernel args: x_ref, (w_ref, packed_ref) * n_layers, o_ref
      x_ref:      [Bp, D0p]      f32 (zero-padded)
      w_ref i:    [Dinp, Doutp]  bf16 (zero-padded)
      packed i:   [8, Doutp]     f32, rows: 0=bias, 1=gamma, 2=beta (rest zero)
      o_ref:      [Bp, DLp]      f32
    """
    inv_b = 1.0 / float(real_batch)

    def kernel(*refs):
        x_ref = refs[0]
        o_ref = refs[-1]

        h = x_ref[...]  # f32 [Bp, D0p]
        b_pad = h.shape[0]
        # Mask selecting the real batch rows (padded rows excluded from stats).
        row_mask = (
            jax.lax.broadcasted_iota(jnp.int32, (b_pad, 1), 0) < real_batch
        ).astype(jnp.float32)

        for i in range(n_layers):
            w = refs[1 + 2 * i][...]          # bf16 [Dinp, Doutp]
            packed = refs[2 + 2 * i][...]     # f32  [8, Doutp]
            bias = packed[0:1, :]             # [1, Doutp]
            gamma = packed[1:2, :]
            beta = packed[2:3, :]

            # Linear: MXU matmul with bf16 inputs, f32 accumulation.
            y = (
                jnp.dot(h.astype(jnp.bfloat16), w,
                        preferred_element_type=jnp.float32)
                + bias
            )

            # BatchNorm1d (training mode): batch mean / biased variance over
            # the REAL batch rows only, then fold into one scale/shift.
            ym = y * row_mask
            mean = jnp.sum(ym, axis=0, keepdims=True) * inv_b
            cen = (y - mean) * row_mask
            var = jnp.sum(cen * cen, axis=0, keepdims=True) * inv_b
            scale = gamma * jax.lax.rsqrt(var + BN_EPS)
            shift = beta - mean * scale

            # BN + ReLU epilogue in f32.
            h = jnp.maximum(y * scale + shift, 0.0)

        o_ref[...] = h.astype(o_ref.dtype)

    return kernel


def decoder_forward(x, params):
    """Fused forward pass of the whole decoder in a single pallas_call."""
    B, d0 = x.shape
    n_layers = len(params)
    dims = [d0] + [w.shape[1] for (w, _, _, _) in params]

    bp = max(_round_up(B, SUBLANE), SUBLANE)
    dims_p = [max(_round_up(d, LANE), LANE) for d in dims]

    # Zero-pad the input activation to lane/sublane-dense shape.
    x_p = jnp.zeros((bp, dims_p[0]), jnp.float32).at[:B, :d0].set(x)

    kernel_inputs = [x_p]
    for i, (w, b, gamma, beta) in enumerate(params):
        din, dout = w.shape
        dinp, doutp = dims_p[i], dims_p[i + 1]
        # bf16 weights: halve HBM traffic and unlock full MXU rate.
        w_p = (
            jnp.zeros((dinp, doutp), jnp.bfloat16)
            .at[:din, :dout].set(w.astype(jnp.bfloat16))
        )
        # Pack bias / gamma / beta into one (8, Doutp) f32 array.
        p = jnp.zeros((SUBLANE, doutp), jnp.float32)
        p = p.at[0, :dout].set(b).at[1, :dout].set(gamma).at[2, :dout].set(beta)
        kernel_inputs += [w_p, p]

    kernel = _make_decoder_kernel(n_layers, B)
    out_p = pl.pallas_call(
        kernel,
        out_shape=jax.ShapeDtypeStruct((bp, dims_p[-1]), jnp.float32),
        in_specs=[pl.BlockSpec(memory_space=pltpu.MemorySpace.VMEM)]
        * len(kernel_inputs),
        out_specs=pl.BlockSpec(memory_space=pltpu.MemorySpace.VMEM),
        compiler_params=pltpu.CompilerParams(vmem_limit_bytes=64 * 1024 * 1024),
    )(*kernel_inputs)

    # Slice off the padding.
    return out_p[:B, : dims[-1]]


def init_decoder_params(key, input_dim, embedding_dim):
    """Deterministic parameter init matching the PyTorch module's shapes.

    decoder_dim = reversed(embedding_dim) + [input_dim]
    layer i: Linear(decoder_dim[i], decoder_dim[i+1]), BatchNorm1d(decoder_dim[i+1])
    """
    decoder_dim = [d for d in reversed(embedding_dim)]
    decoder_dim.append(input_dim)
    n_layers = len(decoder_dim) - 1

    params = []
    for i in range(n_layers):
        din, dout = decoder_dim[i], decoder_dim[i + 1]
        key, kw, kb = jax.random.split(key, 3)
        # PyTorch Linear default: uniform(-1/sqrt(din), 1/sqrt(din))
        bound = 1.0 / jnp.sqrt(jnp.float32(din))
        w = jax.random.uniform(kw, (din, dout), jnp.float32, -bound, bound)
        b = jax.random.uniform(kb, (dout,), jnp.float32, -bound, bound)
        gamma = jnp.ones((dout,), jnp.float32)   # BN weight init
        beta = jnp.zeros((dout,), jnp.float32)   # BN bias init
        params.append((w, b, gamma, beta))
    return params


def decoder_reference(x, params):
    """Plain-JAX reference (same bf16-input / f32-accumulate matmul policy)."""
    h = x
    for (w, b, gamma, beta) in params:
        y = jnp.dot(h.astype(jnp.bfloat16), w.astype(jnp.bfloat16),
                    preferred_element_type=jnp.float32) + b
        mean = jnp.mean(y, axis=0, keepdims=True)
        var = jnp.mean((y - mean) ** 2, axis=0, keepdims=True)
        y = (y - mean) * jax.lax.rsqrt(var + BN_EPS) * gamma + beta
        h = jnp.maximum(y, 0.0)
    return h


if __name__ == "__main__":
    # Small shapes consistent with the module:
    #   embedding_dim = [16, 8]  ->  decoder_dim = [8, 16, 32]
    #   layers: Linear(8,16)+BN+ReLU, Linear(16,32)+BN+ReLU
    input_dim = 32
    embedding_dim = [16, 8]
    batch = 8

    key = jax.random.PRNGKey(0)
    key, kx = jax.random.split(key)
    x = jax.random.normal(kx, (batch, embedding_dim[-1]), jnp.float32)  # [8, 8]

    params = init_decoder_params(key, input_dim, embedding_dim)

    fwd = jax.jit(decoder_forward)
    out = jax.block_until_ready(fwd(x, params))

    ref = decoder_reference(x, params)
    assert out.shape == (batch, input_dim), out.shape
    max_err = float(jnp.max(jnp.abs(out - ref)))
    assert jnp.allclose(out, ref, atol=1e-3, rtol=1e-3), max_err

    print("KERNEL_OK")
</pallas_src>

<mosaic_0001>
module attributes {stable_mosaic.version = 11 : i64} {
  func.func @kernel(%arg0: memref<8x128xf32, #tpu.memory_space<vmem>>, %arg1: memref<128x128xbf16, #tpu.memory_space<vmem>>, %arg2: memref<8x128xf32, #tpu.memory_space<vmem>>, %arg3: memref<128x128xbf16, #tpu.memory_space<vmem>>, %arg4: memref<8x128xf32, #tpu.memory_space<vmem>>, %arg5: memref<8x128xf32, #tpu.memory_space<vmem>>) attributes {dimension_semantics = [], scalar_prefetch = 0 : i64, scratch_operands = 0 : i64, tpu.core_type = #tpu.core_type<tc>} {
    %c0 = arith.constant 0 : index
    %c0_0 = arith.constant 0 : index
    %0 = vector.load %arg0[%c0, %c0_0] : memref<8x128xf32, #tpu.memory_space<vmem>>, vector<8x128xf32>
    %1 = tpu.iota {dimensions = array<i32: 0>} : vector<8x1xi32>
    %c8_i32 = arith.constant 8 : i32
    %2 = vector.broadcast %c8_i32 : i32 to vector<8x1xi32>
    %3 = arith.cmpi slt, %1, %2 : vector<8x1xi32>
    %4 = arith.extui %3 : vector<8x1xi1> to vector<8x1xi32>
    %5 = arith.sitofp %4 : vector<8x1xi32> to vector<8x1xf32>
    %c0_1 = arith.constant 0 : index
    %c0_2 = arith.constant 0 : index
    %6 = vector.load %arg1[%c0_1, %c0_2] : memref<128x128xbf16, #tpu.memory_space<vmem>>, vector<128x128xbf16>
    %c0_3 = arith.constant 0 : index
    %c0_4 = arith.constant 0 : index
    %7 = vector.load %arg2[%c0_3, %c0_4] : memref<8x128xf32, #tpu.memory_space<vmem>>, vector<8x128xf32>
    %8 = vector.extract_strided_slice %7 {offsets = [0, 0], sizes = [1, 128], strides = [1, 1]} : vector<8x128xf32> to vector<1x128xf32>
    %9 = vector.extract_strided_slice %7 {offsets = [1, 0], sizes = [1, 128], strides = [1, 1]} : vector<8x128xf32> to vector<1x128xf32>
    %10 = vector.extract_strided_slice %7 {offsets = [2, 0], sizes = [1, 128], strides = [1, 1]} : vector<8x128xf32> to vector<1x128xf32>
    %11 = arith.truncf %0 : vector<8x128xf32> to vector<8x128xbf16>
    %cst = arith.constant dense<0.000000e+00> : vector<8x128xf32>
    %12 = tpu.matmul %11, %6, %cst {dimension_numbers = #tpu.dot_dimension_numbers<[1], [0], [0], [1], [0, 0, 1, 1], [], []>} : vector<8x128xbf16>, vector<128x128xbf16>, vector<8x128xf32> -> vector<8x128xf32>
    %13 = vector.broadcast %8 : vector<1x128xf32> to vector<8x128xf32>
    %14 = arith.addf %12, %13 : vector<8x128xf32>
    %15 = vector.broadcast %5 : vector<8x1xf32> to vector<8x128xf32>
    %16 = arith.mulf %14, %15 : vector<8x128xf32>
    %cst_5 = arith.constant dense<0.000000e+00> : vector<128xf32>
    %17 = vector.multi_reduction <add>, %16, %cst_5 [0] : vector<8x128xf32> to vector<128xf32>
    %18 = vector.shape_cast %17 : vector<128xf32> to vector<1x128xf32>
    %cst_6 = arith.constant 1.250000e-01 : f32
    %19 = vector.broadcast %cst_6 : f32 to vector<1x128xf32>
    %20 = arith.mulf %18, %19 : vector<1x128xf32>
    %21 = vector.broadcast %20 : vector<1x128xf32> to vector<8x128xf32>
    %22 = arith.subf %14, %21 : vector<8x128xf32>
    %23 = vector.broadcast %5 : vector<8x1xf32> to vector<8x128xf32>
    %24 = arith.mulf %22, %23 : vector<8x128xf32>
    %25 = arith.mulf %24, %24 : vector<8x128xf32>
    %cst_7 = arith.constant dense<0.000000e+00> : vector<128xf32>
    %26 = vector.multi_reduction <add>, %25, %cst_7 [0] : vector<8x128xf32> to vector<128xf32>
    %27 = vector.shape_cast %26 : vector<128xf32> to vector<1x128xf32>
    %cst_8 = arith.constant 1.250000e-01 : f32
    %28 = vector.broadcast %cst_8 : f32 to vector<1x128xf32>
    %29 = arith.mulf %27, %28 : vector<1x128xf32>
    %cst_9 = arith.constant 9.99999974E-6 : f32
    %30 = vector.broadcast %cst_9 : f32 to vector<1x128xf32>
    %31 = arith.addf %29, %30 : vector<1x128xf32>
    %32 = math.rsqrt %31 : vector<1x128xf32>
    %33 = arith.mulf %9, %32 : vector<1x128xf32>
    %34 = arith.mulf %20, %33 : vector<1x128xf32>
    %35 = arith.subf %10, %34 : vector<1x128xf32>
    %36 = vector.broadcast %33 : vector<1x128xf32> to vector<8x128xf32>
    %37 = arith.mulf %14, %36 : vector<8x128xf32>
    %38 = vector.broadcast %35 : vector<1x128xf32> to vector<8x128xf32>
    %39 = arith.addf %37, %38 : vector<8x128xf32>
    %cst_10 = arith.constant 0.000000e+00 : f32
    %40 = vector.broadcast %cst_10 : f32 to vector<8x128xf32>
    %41 = arith.maximumf %39, %40 : vector<8x128xf32>
    %c0_11 = arith.constant 0 : index
    %c0_12 = arith.constant 0 : index
    %42 = vector.load %arg3[%c0_11, %c0_12] : memref<128x128xbf16, #tpu.memory_space<vmem>>, vector<128x128xbf16>
    %c0_13 = arith.constant 0 : index
    %c0_14 = arith.constant 0 : index
    %43 = vector.load %arg4[%c0_13, %c0_14] : memref<8x128xf32, #tpu.memory_space<vmem>>, vector<8x128xf32>
    %44 = vector.extract_strided_slice %43 {offsets = [0, 0], sizes = [1, 128], strides = [1, 1]} : vector<8x128xf32> to vector<1x128xf32>
    %45 = vector.extract_strided_slice %43 {offsets = [1, 0], sizes = [1, 128], strides = [1, 1]} : vector<8x128xf32> to vector<1x128xf32>
    %46 = vector.extract_strided_slice %43 {offsets = [2, 0], sizes = [1, 128], strides = [1, 1]} : vector<8x128xf32> to vector<1x128xf32>
    %47 = arith.truncf %41 : vector<8x128xf32> to vector<8x128xbf16>
    %cst_15 = arith.constant dense<0.000000e+00> : vector<8x128xf32>
    %48 = tpu.matmul %47, %42, %cst_15 {dimension_numbers = #tpu.dot_dimension_numbers<[1], [0], [0], [1], [0, 0, 1, 1], [], []>} : vector<8x128xbf16>, vector<128x128xbf16>, vector<8x128xf32> -> vector<8x128xf32>
    %49 = vector.broadcast %44 : vector<1x128xf32> to vector<8x128xf32>
    %50 = arith.addf %48, %49 : vector<8x128xf32>
    %51 = vector.broadcast %5 : vector<8x1xf32> to vector<8x128xf32>
    %52 = arith.mulf %50, %51 : vector<8x128xf32>
    %cst_16 = arith.constant dense<0.000000e+00> : vector<128xf32>
    %53 = vector.multi_reduction <add>, %52, %cst_16 [0] : vector<8x128xf32> to vector<128xf32>
    %54 = vector.shape_cast %53 : vector<128xf32> to vector<1x128xf32>
    %cst_17 = arith.constant 1.250000e-01 : f32
    %55 = vector.broadcast %cst_17 : f32 to vector<1x128xf32>
    %56 = arith.mulf %54, %55 : vector<1x128xf32>
    %57 = vector.broadcast %56 : vector<1x128xf32> to vector<8x128xf32>
    %58 = arith.subf %50, %57 : vector<8x128xf32>
    %59 = vector.broadcast %5 : vector<8x1xf32> to vector<8x128xf32>
    %60 = arith.mulf %58, %59 : vector<8x128xf32>
    %61 = arith.mulf %60, %60 : vector<8x128xf32>
    %cst_18 = arith.constant dense<0.000000e+00> : vector<128xf32>
    %62 = vector.multi_reduction <add>, %61, %cst_18 [0] : vector<8x128xf32> to vector<128xf32>
    %63 = vector.shape_cast %62 : vector<128xf32> to vector<1x128xf32>
    %cst_19 = arith.constant 1.250000e-01 : f32
    %64 = vector.broadcast %cst_19 : f32 to vector<1x128xf32>
    %65 = arith.mulf %63, %64 : vector<1x128xf32>
    %cst_20 = arith.constant 9.99999974E-6 : f32
    %66 = vector.broadcast %cst_20 : f32 to vector<1x128xf32>
    %67 = arith.addf %65, %66 : vector<1x128xf32>
    %68 = math.rsqrt %67 : vector<1x128xf32>
    %69 = arith.mulf %45, %68 : vector<1x128xf32>
    %70 = arith.mulf %56, %69 : vector<1x128xf32>
    %71 = arith.subf %46, %70 : vector<1x128xf32>
    %72 = vector.broadcast %69 : vector<1x128xf32> to vector<8x128xf32>
    %73 = arith.mulf %50, %72 : vector<8x128xf32>
    %74 = vector.broadcast %71 : vector<1x128xf32> to vector<8x128xf32>
    %75 = arith.addf %73, %74 : vector<8x128xf32>
    %cst_21 = arith.constant 0.000000e+00 : f32
    %76 = vector.broadcast %cst_21 : f32 to vector<8x128xf32>
    %77 = arith.maximumf %75, %76 : vector<8x128xf32>
    %c0_22 = arith.constant 0 : index
    %c0_23 = arith.constant 0 : index
    %78 = vector.load %arg5[%c0_22, %c0_23] : memref<8x128xf32, #tpu.memory_space<vmem>>, vector<8x128xf32>
    tpu.vector_store %arg5[%c0_22, %c0_23], %77 {strides = array<i32>} : memref<8x128xf32, #tpu.memory_space<vmem>>, vector<8x128xf32>,
    return
  }
}

</mosaic_0001>

<llo_original>
// kernel: decoder_forward.1
$region0: #{decoder_forward.1}
  #allocation0 [shape = 'u32[]', space=smem, size = 0x4, offset = 0x4, fixed_abs, tag = 'smem constant byte address 0x4 - core index']
  #allocation1 [shape = 'u32[144,128]{1,0:T(1,128)}', space=vmem, size = 0x12000, scoped, tag = 'internal scratch']
  %s0 = inlined_call_operand.hbm [shape: f32[8,128], index: 0, kind: input, shape index: {}]
  %s1 = inlined_call_operand.hbm [shape: bf16[128,128], index: 1, kind: input, shape index: {}]
  %s2 = inlined_call_operand.hbm [shape: f32[8,128], index: 2, kind: input, shape index: {}]
  %s3 = inlined_call_operand.hbm [shape: bf16[128,128], index: 3, kind: input, shape index: {}]
  %s4 = inlined_call_operand.hbm [shape: f32[8,128], index: 4, kind: input, shape index: {}]
  %s5 = inlined_call_operand.hbm [shape: f32[8,128], index: 5, kind: output, shape index: {}]
  %s6 = sld [smem:[#allocation0]]
  $region50: #{decoder_forward.1} parent=0
    _
  %s8 = ssub.s32 1, %s6
  %s9 = scalar_select 0, %s8, %s6
  $region1: #{decoder_forward.1} parent=0
    #allocation2 [shape = 'u8[4096]{0}', space=vmem, size = 0x1000, scoped, tag = 'input window, operand 0, single buffered']
    #allocation3 [shape = 's32[1]{0}', space=sflag, size = 0x4, scoped, tag = 'scoped memory for decoder_forward.1']
    #allocation4 [shape = 's32[1]{0}', space=sflag, size = 0x4, scoped, tag = 'scoped memory for decoder_forward.1']
    #allocation5 [shape = 'u8[32768]{0}', space=vmem, size = 0x8000, scoped, tag = 'input window, operand 1, single buffered']
    #allocation6 [shape = 's32[1]{0}', space=sflag, size = 0x4, scoped, tag = 'scoped memory for decoder_forward.1']
    #allocation7 [shape = 'u8[4096]{0}', space=vmem, size = 0x1000, scoped, tag = 'input window, operand 2, single buffered']
    #allocation8 [shape = 'u8[32768]{0}', space=vmem, size = 0x8000, scoped, tag = 'input window, operand 3, single buffered']
    #allocation9 [shape = 's32[1]{0}', space=sflag, size = 0x4, scoped, tag = 'scoped memory for decoder_forward.1']
    #allocation10 [shape = 'u8[4096]{0}', space=vmem, size = 0x1000, scoped, tag = 'input window, operand 4, single buffered']
    #allocation11 [shape = 'u8[4096]{0}', space=vmem, size = 0x1000, scoped, tag = 'output window, operand 0, single buffered']
    %10 = vsyncpa [#allocation3], 0
    %11 = vsyncpa [#allocation6], 0
    %12 = vsyncpa [#allocation9], 0
    %13 = vsyncpa [#allocation4], 0
    // Predicated region
    $region2: #{decoder_forward.1} parent=1 // pred_check
      _
    $region3: #{decoder_forward.1} parent=1 // pred_check_branch
      %15 = sbr.rel (0) target = $region5
    $region4: #{decoder_forward.1} parent=1 // pred_region
      %s17 = ssub.s32 128, 128
      %18 = vsyncadd [#allocation3], %s17
      %s20 = sshll.u32 [#allocation2], 4
      %s21 = int_to_ptr.vmem [resolvable:$true] %s20
      %23 = dma.hbm_to_vmem [thread:$0]  %s0, 128, %s21, [#allocation3]
    $region5: #{decoder_forward.1} parent=1 // pred_fallthru
      _
    // Predicated region
    $region6: #{decoder_forward.1} parent=1 // pred_check
      _
    $region7: #{decoder_forward.1} parent=1 // pred_check_branch
      %25 = sbr.rel (0) target = $region9
    $region8: #{decoder_forward.1} parent=1 // pred_region
      %s27 = ssub.s32 1024, 1024
      %28 = vsyncadd [#allocation6], %s27
      %s29 = sshll.u32 [#allocation5], 4
      %s30 = int_to_ptr.vmem [resolvable:$true] %s29
      %35 = dma.hbm_to_vmem [thread:$0]  %s1, 1024, %s30, [#allocation6], 64, 64, 4
    $region9: #{decoder_forward.1} parent=1 // pred_fallthru
      _
    // Predicated region
    $region10: #{decoder_forward.1} parent=1 // pred_check
      _
    $region11: #{decoder_forward.1} parent=1 // pred_check_branch
      %37 = sbr.rel (0) target = $region13
    $region12: #{decoder_forward.1} parent=1 // pred_region
      %s39 = ssub.s32 128, 128
      %40 = vsyncadd [#allocation6], %s39
      %s42 = sshll.u32 [#allocation7], 4
      %s43 = int_to_ptr.vmem [resolvable:$true] %s42
      %45 = dma.hbm_to_vmem [thread:$0]  %s2, 128, %s43, [#allocation6]
    $region13: #{decoder_forward.1} parent=1 // pred_fallthru
      _
    // Predicated region
    $region14: #{decoder_forward.1} parent=1 // pred_check
      _
    $region15: #{decoder_forward.1} parent=1 // pred_check_branch
      %47 = sbr.rel (0) target = $region17
    $region16: #{decoder_forward.1} parent=1 // pred_region
      %s49 = ssub.s32 1024, 1024
      %50 = vsyncadd [#allocation9], %s49
      %s51 = sshll.u32 [#allocation8], 4
      %s52 = int_to_ptr.vmem [resolvable:$true] %s51
      %57 = dma.hbm_to_vmem [thread:$0]  %s3, 1024, %s52, [#allocation9], 64, 64, 4
    $region17: #{decoder_forward.1} parent=1 // pred_fallthru
      _
    // Predicated region
    $region18: #{decoder_forward.1} parent=1 // pred_check
      _
    $region19: #{decoder_forward.1} parent=1 // pred_check_branch
      %59 = sbr.rel (0) target = $region21
    $region20: #{decoder_forward.1} parent=1 // pred_region
      %s61 = ssub.s32 128, 128
      %62 = vsyncadd [#allocation9], %s61
      %s64 = sshll.u32 [#allocation10], 4
      %s65 = int_to_ptr.vmem [resolvable:$true] %s64
      %67 = dma.hbm_to_vmem [thread:$0]  %s4, 128, %s65, [#allocation9]
    $region21: #{decoder_forward.1} parent=1 // pred_fallthru
      _
    // Predicated region
    $region22: #{decoder_forward.1} parent=1 // pred_check
      _
    $region23: #{decoder_forward.1} parent=1 // pred_check_branch
      %69 = sbr.rel (0) target = $region25
    $region24: #{decoder_forward.1} parent=1 // pred_region
      %70 = dma.done [#allocation3], 128
    $region25: #{decoder_forward.1} parent=1 // pred_fallthru
      _
    // Predicated region
    $region26: #{decoder_forward.1} parent=1 // pred_check
      _
    $region27: #{decoder_forward.1} parent=1 // pred_check_branch
      %72 = sbr.rel (0) target = $region29
    $region28: #{decoder_forward.1} parent=1 // pred_region
      %73 = dma.done [#allocation6], 1024
    $region29: #{decoder_forward.1} parent=1 // pred_fallthru
      _
    // Predicated region
    $region30: #{decoder_forward.1} parent=1 // pred_check
      _
    $region31: #{decoder_forward.1} parent=1 // pred_check_branch
      %75 = sbr.rel (0) target = $region33
    $region32: #{decoder_forward.1} parent=1 // pred_region
      %76 = dma.done [#allocation6], 128
    $region33: #{decoder_forward.1} parent=1 // pred_fallthru
      _
    // Predicated region
    $region34: #{decoder_forward.1} parent=1 // pred_check
      _
    $region35: #{decoder_forward.1} parent=1 // pred_check_branch
      %78 = sbr.rel (0) target = $region37
    $region36: #{decoder_forward.1} parent=1 // pred_region
      %79 = dma.done [#allocation9], 1024
    $region37: #{decoder_forward.1} parent=1 // pred_fallthru
      _
    // Predicated region
    $region38: #{decoder_forward.1} parent=1 // pred_check
      _
    $region39: #{decoder_forward.1} parent=1 // pred_check_branch
      %81 = sbr.rel (0) target = $region41
    $region40: #{decoder_forward.1} parent=1 // pred_region
      %82 = dma.done [#allocation9], 128
    $region41: #{decoder_forward.1} parent=1 // pred_fallthru
      _
    %v84 = vld [vmem:[#allocation2] sm:$0xff]
    %v85 = vlaneseq
    %v86 = vshrl.u32 %v85, 7
    %vm87 = vcmp.lt.s32.totalorder %v86, 8
    %v88 = vsel %vm87, 1, 0
    %v89 = vcvt.s32.f32 %v88
    %v90 = vld [vmem:[#allocation5] sm:$0xf]
    %v91 = vld [vmem:[#allocation5 + $0x4] sm:$0xf]
    %v92 = vld [vmem:[#allocation5 + $0x8] sm:$0xf]
    %v93 = vld [vmem:[#allocation5 + $0xc] sm:$0xf]
    %v94 = vld [vmem:[#allocation5 + $0x10] sm:$0xf]
    %v95 = vld [vmem:[#allocation5 + $0x14] sm:$0xf]
    %v96 = vld [vmem:[#allocation5 + $0x18] sm:$0xf]
    %v97 = vld [vmem:[#allocation5 + $0x1c] sm:$0xf]
    %v98 = vld [vmem:[#allocation5 + $0x20] sm:$0xf]
    %v99 = vld [vmem:[#allocation5 + $0x24] sm:$0xf]
    %v100 = vld [vmem:[#allocation5 + $0x28] sm:$0xf]
    %v101 = vld [vmem:[#allocation5 + $0x2c] sm:$0xf]
    %v102 = vld [vmem:[#allocation5 + $0x30] sm:$0xf]
    %v103 = vld [vmem:[#allocation5 + $0x34] sm:$0xf]
    %v104 = vld [vmem:[#allocation5 + $0x38] sm:$0xf]
    %v105 = vld [vmem:[#allocation5 + $0x3c] sm:$0xf]
    %v106 = vld [vmem:[#allocation7] sm:$0xff]
    %v107 = vpack.c.bf16 %v84, %v84
    %v108 = vlaneseq
    %v109 = vshrl.u32 %v108, 7
    %v110 = vsub.s32 0, %v109
    %v111 = vrot.slane %v106, %v110
    %v128 = vunpack.c.l.b16 %v90
    %v129 = vunpack.c.l.b16 %v91
    %v130 = vunpack.c.l.b16 %v92
    %v131 = vunpack.c.l.b16 %v93
    %v132 = vunpack.c.l.b16 %v94
    %v133 = vunpack.c.l.b16 %v95
    %v134 = vunpack.c.l.b16 %v96
    %v135 = vunpack.c.l.b16 %v97
    %v136 = vunpack.c.l.b16 %v98
    %v137 = vunpack.c.l.b16 %v99
    %v138 = vunpack.c.l.b16 %v100
    %v139 = vunpack.c.l.b16 %v101
    %v140 = vunpack.c.l.b16 %v102
    %v141 = vunpack.c.l.b16 %v103
    %v142 = vunpack.c.l.b16 %v104
    %v143 = vunpack.c.l.b16 %v105
    %v144 = vpack.c.b16 %v129, %v128
    %v145 = vpack.c.b16 %v131, %v130
    %v146 = vpack.c.b16 %v133, %v132
    %v147 = vpack.c.b16 %v135, %v134
    %v148 = vpack.c.b16 %v137, %v136
    %v149 = vpack.c.b16 %v139, %v138
    %v150 = vpack.c.b16 %v141, %v140
    %v151 = vpack.c.b16 %v143, %v142
    %160 = vmatprep.subr.bf16.mxu0 0
    %161 = vmatpush1.bf16.msra.mxu0 %v144
    %162 = vmatprep.subr.bf16.mxu0 0
    %163 = vmatpush1.bf16.msra.mxu0 %v145
    %164 = vmatprep.subr.bf16.mxu0 0
    %165 = vmatpush1.bf16.msra.mxu0 %v146
    %166 = vmatprep.subr.bf16.mxu0 0
    %167 = vmatpush1.bf16.msra.mxu0 %v147
    %168 = vmatprep.subr.bf16.mxu0 0
    %169 = vmatpush1.bf16.msra.mxu0 %v148
    %170 = vmatprep.subr.bf16.mxu0 0
    %171 = vmatpush1.bf16.msra.mxu0 %v149
    %172 = vmatprep.subr.bf16.mxu0 0
    %173 = vmatpush1.bf16.msra.mxu0 %v150
    %174 = vmatprep.subr.bf16.mxu0 0
    %175 = vmatpush1.bf16.msra.mxu0 %v151
    %176 = vmatprep.subr.bf16.mxu0 0
    %177 = vmatpush1.bf16.msra.mxu0 0
    %178 = vmatprep.subr.bf16.mxu0 0
    %179 = vmatpush1.bf16.msra.mxu0 0
    %180 = vmatprep.subr.bf16.mxu0 0
    %181 = vmatpush1.bf16.msra.mxu0 0
    %182 = vmatprep.subr.bf16.mxu0 0
    %183 = vmatpush1.bf16.msra.mxu0 0
    %184 = vmatprep.subr.bf16.mxu0 0
    %185 = vmatpush1.bf16.msra.mxu0 0
    %186 = vmatprep.subr.bf16.mxu0 0
    %187 = vmatpush1.bf16.msra.mxu0 0
    %188 = vmatprep.subr.bf16.mxu0 0
    %189 = vmatpush1.bf16.msra.mxu0 0
    %190 = vmatprep.subr.bf16.mxu0 0
    %191 = vmatpush1.bf16.msra.mxu0 0
    %192 = vmatprep.mubr.bf16.mxu0 0
    %193 = vmatmul.mubr.bf16.gmra.mrb[0].mxu0 %v107
    %v194 = vpop.f32.mrb[0].mxu0
    %v195 = vadd.f32 %v111, %v194
    %v196 = vpop.f32.mrb[0].mxu0
    %v197 = vpop.f32.mrb[0].mxu0
    %v198 = vpop.f32.mrb[0].mxu0
    %199 = vdwg.mxu0
    %v200 = vmul.f32 %v195, %v89
    %v201 = vrot.slane %v200, 4
    %v202 = vadd.f32 %v200, %v201
    %v203 = vrot.slane %v202, 2
    %v204 = vadd.f32 %v202, %v203
    %v205 = vrot.slane %v204, 1
    %v206 = vadd.f32 %v204, %v205
    %v207 = vmul.f32 %v206, 0.125
    %v208 = vsub.f32 %v195, %v207
    %v209 = vmul.f32 %v208, %v89
    %v210 = vmul.f32 %v209, %v209
    %v211 = vrot.slane %v210, 4
    %v212 = vadd.f32 %v210, %v211
    %v213 = vrot.slane %v212, 2
    %v214 = vadd.f32 %v212, %v213
    %v215 = vrot.slane %v214, 1
    %v216 = vadd.f32 %v214, %v215
    %v217 = vmul.f32 %v216, 0.125
    %v218 = vadd.f32 %v217, 1e-05
    %v219 = vrsqrt.pop %v218
    %v220 = vmul.f32 %v106, %v219
    %v221 = vmul.f32 %v207, %v220
    %v223 = vrot.slane %v221, 7
    %v225 = vsub.f32 %v106, %v223
    %v226 = vlaneseq
    %v227 = vshrl.u32 %v226, 7
    %v228 = vsub.s32 1, %v227
    %v229 = vrot.slane %v220, %v228
    %v230 = vmul.f32 %v195, %v229
    %v231 = vlaneseq
    %v232 = vshrl.u32 %v231, 7
    %v233 = vsub.s32 2, %v232
    %v234 = vrot.slane %v225, %v233
    %v235 = vadd.f32 %v230, %v234
    %v236 = vmax.f32 %v235, 0.0
    %v237 = vld [vmem:[#allocation8] sm:$0xf]
    %v238 = vld [vmem:[#allocation8 + $0x4] sm:$0xf]
    %v239 = vld [vmem:[#allocation8 + $0x8] sm:$0xf]
    %v240 = vld [vmem:[#allocation8 + $0xc] sm:$0xf]
    %v241 = vld [vmem:[#allocation8 + $0x10] sm:$0xf]
    %v242 = vld [vmem:[#allocation8 + $0x14] sm:$0xf]
    %v243 = vld [vmem:[#allocation8 + $0x18] sm:$0xf]
    %v244 = vld [vmem:[#allocation8 + $0x1c] sm:$0xf]
    %v245 = vld [vmem:[#allocation8 + $0x20] sm:$0xf]
    %v246 = vld [vmem:[#allocation8 + $0x24] sm:$0xf]
    %v247 = vld [vmem:[#allocation8 + $0x28] sm:$0xf]
    %v248 = vld [vmem:[#allocation8 + $0x2c] sm:$0xf]
    %v249 = vld [vmem:[#allocation8 + $0x30] sm:$0xf]
    %v250 = vld [vmem:[#allocation8 + $0x34] sm:$0xf]
    %v251 = vld [vmem:[#allocation8 + $0x38] sm:$0xf]
    %v252 = vld [vmem:[#allocation8 + $0x3c] sm:$0xf]
    %v253 = vld [vmem:[#allocation10] sm:$0xff]
    %v254 = vpack.c.bf16 %v236, %v236
    %v255 = vlaneseq
    %v256 = vshrl.u32 %v255, 7
    %v257 = vsub.s32 0, %v256
    %v258 = vrot.slane %v253, %v257
    %v275 = vunpack.c.l.b16 %v237
    %v276 = vunpack.c.l.b16 %v238
    %v277 = vunpack.c.l.b16 %v239
    %v278 = vunpack.c.l.b16 %v240
    %v279 = vunpack.c.l.b16 %v241
    %v280 = vunpack.c.l.b16 %v242
    %v281 = vunpack.c.l.b16 %v243
    %v282 = vunpack.c.l.b16 %v244
    %v283 = vunpack.c.l.b16 %v245
    %v284 = vunpack.c.l.b16 %v246
    %v285 = vunpack.c.l.b16 %v247
    %v286 = vunpack.c.l.b16 %v248
    %v287 = vunpack.c.l.b16 %v249
    %v288 = vunpack.c.l.b16 %v250
    %v289 = vunpack.c.l.b16 %v251
    %v290 = vunpack.c.l.b16 %v252
    %v291 = vpack.c.b16 %v276, %v275
    %v292 = vpack.c.b16 %v278, %v277
    %v293 = vpack.c.b16 %v280, %v279
    %v294 = vpack.c.b16 %v282, %v281
    %v295 = vpack.c.b16 %v284, %v283
    %v296 = vpack.c.b16 %v286, %v285
    %v297 = vpack.c.b16 %v288, %v287
    %v298 = vpack.c.b16 %v290, %v289
    %307 = vmatprep.subr.bf16.mxu0 0
    %308 = vmatpush1.bf16.msra.mxu0 %v291
    %309 = vmatprep.subr.bf16.mxu0 0
    %310 = vmatpush1.bf16.msra.mxu0 %v292
    %311 = vmatprep.subr.bf16.mxu0 0
    %312 = vmatpush1.bf16.msra.mxu0 %v293
    %313 = vmatprep.subr.bf16.mxu0 0
    %314 = vmatpush1.bf16.msra.mxu0 %v294
    %315 = vmatprep.subr.bf16.mxu0 0
    %316 = vmatpush1.bf16.msra.mxu0 %v295
    %317 = vmatprep.subr.bf16.mxu0 0
    %318 = vmatpush1.bf16.msra.mxu0 %v296
    %319 = vmatprep.subr.bf16.mxu0 0
    %320 = vmatpush1.bf16.msra.mxu0 %v297
    %321 = vmatprep.subr.bf16.mxu0 0
    %322 = vmatpush1.bf16.msra.mxu0 %v298
    %323 = vmatprep.subr.bf16.mxu0 0
    %324 = vmatpush1.bf16.msra.mxu0 0
    %325 = vmatprep.subr.bf16.mxu0 0
    %326 = vmatpush1.bf16.msra.mxu0 0
    %327 = vmatprep.subr.bf16.mxu0 0
    %328 = vmatpush1.bf16.msra.mxu0 0
    %329 = vmatprep.subr.bf16.mxu0 0
    %330 = vmatpush1.bf16.msra.mxu0 0
    %331 = vmatprep.subr.bf16.mxu0 0
    %332 = vmatpush1.bf16.msra.mxu0 0
    %333 = vmatprep.subr.bf16.mxu0 0
    %334 = vmatpush1.bf16.msra.mxu0 0
    %335 = vmatprep.subr.bf16.mxu0 0
    %336 = vmatpush1.bf16.msra.mxu0 0
    %337 = vmatprep.subr.bf16.mxu0 0
    %338 = vmatpush1.bf16.msra.mxu0 0
    %339 = vmatprep.mubr.bf16.mxu0 0
    %340 = vmatmul.mubr.bf16.gmra.mrb[0].mxu0 %v254
    %v341 = vpop.f32.mrb[0].mxu0
    %v342 = vadd.f32 %v258, %v341
    %v343 = vpop.f32.mrb[0].mxu0
    %v344 = vpop.f32.mrb[0].mxu0
    %v345 = vpop.f32.mrb[0].mxu0
    %346 = vdwg.mxu0
    %v347 = vmul.f32 %v342, %v89
    %v348 = vrot.slane %v347, 4
    %v349 = vadd.f32 %v347, %v348
    %v350 = vrot.slane %v349, 2
    %v351 = vadd.f32 %v349, %v350
    %v352 = vrot.slane %v351, 1
    %v353 = vadd.f32 %v351, %v352
    %v354 = vmul.f32 %v353, 0.125
    %v355 = vsub.f32 %v342, %v354
    %v356 = vmul.f32 %v355, %v89
    %v357 = vmul.f32 %v356, %v356
    %v358 = vrot.slane %v357, 4
    %v359 = vadd.f32 %v357, %v358
    %v360 = vrot.slane %v359, 2
    %v361 = vadd.f32 %v359, %v360
    %v362 = vrot.slane %v361, 1
    %v363 = vadd.f32 %v361, %v362
    %v364 = vmul.f32 %v363, 0.125
    %v365 = vadd.f32 %v364, 1e-05
    %v366 = vrsqrt.pop %v365
    %v367 = vmul.f32 %v253, %v366
    %v368 = vmul.f32 %v354, %v367
    %v370 = vrot.slane %v368, 7
    %v372 = vsub.f32 %v253, %v370
    %v373 = vlaneseq
    %v374 = vshrl.u32 %v373, 7
    %v375 = vsub.s32 1, %v374
    %v376 = vrot.slane %v367, %v375
    %v377 = vmul.f32 %v342, %v376
    %v378 = vlaneseq
    %v379 = vshrl.u32 %v378, 7
    %v380 = vsub.s32 2, %v379
    %v381 = vrot.slane %v372, %v380
    %v382 = vadd.f32 %v377, %v381
    %v383 = vmax.f32 %v382, 0.0
    %384 = vst [vmem:[#allocation11] sm:$0xff] %v383
    // Predicated region
    $region42: #{decoder_forward.1} parent=1 // pred_check
      _
    $region43: #{decoder_forward.1} parent=1 // pred_check_branch
      %386 = sbr.rel (0) target = $region45
    $region44: #{decoder_forward.1} parent=1 // pred_region
      %s388 = ssub.s32 128, 128
      %389 = vsyncadd [#allocation4], %s388
      %s391 = sshll.u32 [#allocation11], 4
      %s392 = int_to_ptr.vmem [resolvable:$true] %s391
      %394 = dma.vmem_to_hbm [thread:$0]  %s392, 128, %s5, [#allocation4]
    $region45: #{decoder_forward.1} parent=1 // pred_fallthru
      _
    // Predicated region
    $region46: #{decoder_forward.1} parent=1 // pred_check
      _
    $region47: #{decoder_forward.1} parent=1 // pred_check_branch
      %396 = sbr.rel (0) target = $region49
    $region48: #{decoder_forward.1} parent=1 // pred_region
      %397 = dma.done [#allocation4], 128
    $region49: #{decoder_forward.1} parent=1 // pred_fallthru
      _
    %398 = vsyncpa [#allocation3], 1
    %399 = vsyncpa [#allocation6], 1
    %400 = vsyncpa [#allocation9], 1
    %401 = vsyncpa [#allocation4], 1

</llo_original>
